<compile_context>
chip_gen: v5e
topology: v5e:2x2
jax: 0.10.0
libtpu: 0.0.40
codegen_flags: <defaults>
</compile_context>

<pallas_src>
import math
import functools

import jax
import jax.numpy as jnp
from jax.experimental import pallas as pl
from jax.experimental.pallas import tpu as pltpu


# ---------------------------------------------------------------------------
# Pass 1: global average pool (accumulated over HW tiles) + 1-D channel conv
#         + sigmoid.  Produces attn of shape (B, C, 1) in f32.
# ---------------------------------------------------------------------------
def _eca_attn_kernel(w_ref, x_ref, attn_ref, *, k, pad, inv_hw):
    # w_ref:    (k,)  f32 in SMEM        (Conv1d weight, no bias)
    # x_ref:    (C, hw_tile) in VMEM     (one batch element, one spatial tile)
    # attn_ref: (C, 1) f32 in VMEM       (resident across the HW-tile axis)
    t = pl.program_id(1)

    @pl.when(t == 0)
    def _init():
        attn_ref[...] = jnp.zeros_like(attn_ref)

    # Partial spatial sum for this tile (lane reduction on XLU); accumulate
    # in f32 regardless of the input dtype.
    x = x_ref[...].astype(jnp.float32)                        # (C, hw_tile)
    attn_ref[...] += jnp.sum(x, axis=1, keepdims=True)        # (C, 1)

    @pl.when(t == pl.num_programs(1) - 1)
    def _finalize():
        pooled = attn_ref[...] * inv_hw                       # (C, 1) f32
        c = pooled.shape[0]
        cidx = jax.lax.broadcasted_iota(jnp.int32, (c, 1), 0)
        # Zero-padded 1-D conv along the channel (sublane) axis:
        #   y[i] = sum_j w[j] * pooled[i + j - pad], zero outside [0, C)
        y = jnp.zeros_like(pooled)
        for j in range(k):                                    # static unroll
            s = j - pad
            if s == 0:
                shifted = pooled
            else:
                shifted = pltpu.roll(pooled, shift=(-s) % c, axis=0)
            valid = (cidx + s >= 0) & (cidx + s < c)
            y = y + w_ref[j] * jnp.where(valid, shifted, 0.0)
        attn_ref[...] = jax.nn.sigmoid(y)                     # (C, 1)


# ---------------------------------------------------------------------------
# Pass 2: out = attn * x, tiled over HW (broadcast multiply over lanes).
# ---------------------------------------------------------------------------
def _eca_scale_kernel(attn_ref, x_ref, o_ref):
    attn = attn_ref[...]                                      # (C, 1) f32
    x = x_ref[...].astype(jnp.float32)                        # (C, hw_tile)
    o_ref[...] = (x * attn).astype(o_ref.dtype)


def _pick_hw_tile(hw, c, itemsize, budget_bytes=2 * 1024 * 1024):
    """Largest lane tile that (a) keeps block bytes within a modest budget so
    double-buffered in+out stays below even the 16 MiB v5e scoped-VMEM default
    and (b) satisfies the lane constraint (multiple of 128 or the full dim)."""
    if c * hw * itemsize <= budget_bytes:
        return hw                      # whole spatial extent fits comfortably
    if hw % 128 != 0:
        return hw                      # cannot tile below the full extent cleanly
    max_lanes = max(128, (budget_bytes // (c * itemsize)) // 128 * 128)
    best = 128
    t = 256
    while t <= min(hw, max_lanes):
        if hw % t == 0:
            best = t
        t += 128
    return best


def eca_block_forward(x_nchw, weight, *, k, pad):
    """x_nchw: (B, C, H, W) f32/bf16; weight: (k,) f32 Conv1d kernel (no bias)."""
    B, C, H, W = x_nchw.shape
    HW = H * W
    itemsize = jnp.dtype(x_nchw.dtype).itemsize

    # Metadata-only reshape: channels on sublanes, HW on lanes.  No transpose.
    x_r = x_nchw.reshape(B, C, HW)
    weight = weight.astype(jnp.float32)

    hw_tile = _pick_hw_tile(HW, C, itemsize)
    n_t = HW // hw_tile
    assert hw_tile * n_t == HW

    # Pass 1: attention weights (B, C, 1) in f32.
    attn = pl.pallas_call(
        functools.partial(_eca_attn_kernel, k=k, pad=pad, inv_hw=1.0 / HW),
        out_shape=jax.ShapeDtypeStruct((B, C, 1), jnp.float32),
        grid=(B, n_t),
        in_specs=[
            pl.BlockSpec(memory_space=pltpu.MemorySpace.SMEM),          # weight
            pl.BlockSpec((None, C, hw_tile), lambda b, t: (b, 0, t)),   # x tile
        ],
        out_specs=pl.BlockSpec((None, C, 1), lambda b, t: (b, 0, 0)),
        compiler_params=pltpu.CompilerParams(
            dimension_semantics=("parallel", "arbitrary")),
        cost_estimate=pl.CostEstimate(
            flops=2 * B * C * HW,
            transcendentals=B * C,
            bytes_accessed=B * C * HW * itemsize + B * C * 4),
    )(weight, x_r)

    # Pass 2: out = attn * x (memory-bound broadcast multiply).
    out = pl.pallas_call(
        _eca_scale_kernel,
        out_shape=jax.ShapeDtypeStruct((B, C, HW), x_r.dtype),
        grid=(B, n_t),
        in_specs=[
            pl.BlockSpec((None, C, 1), lambda b, t: (b, 0, 0)),         # attn
            pl.BlockSpec((None, C, hw_tile), lambda b, t: (b, 0, t)),   # x tile
        ],
        out_specs=pl.BlockSpec((None, C, hw_tile), lambda b, t: (b, 0, t)),
        compiler_params=pltpu.CompilerParams(
            dimension_semantics=("parallel", "parallel")),
        cost_estimate=pl.CostEstimate(
            flops=B * C * HW,
            transcendentals=0,
            bytes_accessed=2 * B * C * HW * itemsize + B * C * 4),
    )(attn, x_r)

    return out.reshape(B, C, H, W)


def _eca_kernel_size(in_channel, b=1, gama=2):
    kernel_size = int(abs((math.log(in_channel, 2) + b) / gama))
    if kernel_size % 2:
        kernel_size = kernel_size
    else:
        kernel_size = kernel_size + 1
    return kernel_size


def _reference(x, weight, *, k, pad):
    """Pure-JAX reference mirroring the PyTorch forward (f32)."""
    pooled = jnp.mean(x, axis=(2, 3))                          # (B, C)
    pooled_pad = jnp.pad(pooled, ((0, 0), (pad, pad)))         # (B, C + 2*pad)
    y = jnp.zeros_like(pooled)
    for j in range(k):
        y = y + weight[j] * pooled_pad[:, j:j + pooled.shape[1]]
    attn = jax.nn.sigmoid(y)[:, :, None, None]                 # (B, C, 1, 1)
    return attn * x


if __name__ == "__main__":
    # Module defaults: in_channel=8 -> kernel_size=3, padding=1.
    B, C, H, W = 2, 8, 16, 16
    k = _eca_kernel_size(C)          # 3
    pad = k // 2                     # 1

    key = jax.random.PRNGKey(0)
    kx, kw = jax.random.split(key)
    x = jax.random.normal(kx, (B, C, H, W), dtype=jnp.float32)
    # Deterministic stand-in for the Conv1d(1, 1, k, bias=False) weight (shape (1,1,k)).
    weight = jax.random.normal(kw, (k,), dtype=jnp.float32) * 0.5

    out = jax.block_until_ready(eca_block_forward(x, weight, k=k, pad=pad))
    ref = _reference(x, weight, k=k, pad=pad)
    assert out.shape == (B, C, H, W)
    assert jnp.allclose(out, ref, atol=1e-5, rtol=1e-5), "mismatch vs reference (f32)"

    # bf16 I/O path (halves HBM bytes; pool still accumulated in f32).
    out_bf16 = jax.block_until_ready(
        eca_block_forward(x.astype(jnp.bfloat16), weight, k=k, pad=pad))
    assert out_bf16.dtype == jnp.bfloat16
    assert float(jnp.max(jnp.abs(out_bf16.astype(jnp.float32) - ref))) < 0.1, \
        "mismatch vs reference (bf16)"

    print("KERNEL_OK")
</pallas_src>

<mosaic_0001>
module attributes {stable_mosaic.version = 11 : i64} {
  func.func @_eca_attn_kernel(%arg0: i32, %arg1: i32, %arg2: memref<3xf32, #tpu.memory_space<smem>>, %arg3: memref<1x8x256xf32, #tpu.memory_space<vmem>>, %arg4: memref<1x8x1xf32, #tpu.memory_space<vmem>>) attributes {dimension_semantics = [#tpu.dimension_semantics<parallel>, #tpu.dimension_semantics<arbitrary>], iteration_bounds = array<i64: 2, 1>, scalar_prefetch = 0 : i64, scratch_operands = 0 : i64, tpu.core_type = #tpu.core_type<tc>, window_params = [{transform_indices = @transform_0, window_bounds = array<i64: 3>}, {transform_indices = @transform_1, window_bounds = array<i64: 1, 8, 256>}, {transform_indices = @transform_2, window_bounds = array<i64: 1, 8, 1>}]} {
    %c0_i32 = arith.constant 0 : i32
    %0 = arith.cmpi eq, %arg1, %c0_i32 : i32
    %1 = arith.extui %0 : i1 to i32
    %c0_i32_0 = arith.constant 0 : i32
    %2 = arith.cmpi ne, %1, %c0_i32_0 : i32
    scf.if %2 {
      %cst_11 = arith.constant 0.000000e+00 : f32
      %16 = vector.broadcast %cst_11 : f32 to vector<8x1xf32>
      %c0_12 = arith.constant 0 : index
      %c0_13 = arith.constant 0 : index
      %c0_14 = arith.constant 0 : index
      %17 = vector.load %arg4[%c0_12, %c0_13, %c0_14] : memref<1x8x1xf32, #tpu.memory_space<vmem>>, vector<1x8x1xf32>
      %18 = vector.shape_cast %17 : vector<1x8x1xf32> to vector<8x1xf32>
      %19 = vector.shape_cast %16 : vector<8x1xf32> to vector<1x8x1xf32>
      tpu.vector_store %arg4[%c0_12, %c0_13, %c0_14], %19 {strides = array<i32>} : memref<1x8x1xf32, #tpu.memory_space<vmem>>, vector<1x8x1xf32>,
    } else {
    }
    %c0 = arith.constant 0 : index
    %c0_1 = arith.constant 0 : index
    %c0_2 = arith.constant 0 : index
    %3 = vector.load %arg3[%c0, %c0_1, %c0_2] : memref<1x8x256xf32, #tpu.memory_space<vmem>>, vector<1x8x256xf32>
    %4 = vector.shape_cast %3 : vector<1x8x256xf32> to vector<8x256xf32>
    %c0_3 = arith.constant 0 : index
    %c0_4 = arith.constant 0 : index
    %c0_5 = arith.constant 0 : index
    %5 = vector.load %arg4[%c0_3, %c0_4, %c0_5] : memref<1x8x1xf32, #tpu.memory_space<vmem>>, vector<1x8x1xf32>
    %6 = vector.shape_cast %5 : vector<1x8x1xf32> to vector<8x1xf32>
    %cst = arith.constant dense<0.000000e+00> : vector<8xf32>
    %7 = vector.multi_reduction <add>, %4, %cst [1] : vector<8x256xf32> to vector<8xf32>
    %8 = vector.shape_cast %7 : vector<8xf32> to vector<8x1xf32>
    %9 = arith.addf %6, %8 : vector<8x1xf32>
    %c0_6 = arith.constant 0 : index
    %c0_7 = arith.constant 0 : index
    %c0_8 = arith.constant 0 : index
    %10 = vector.load %arg4[%c0_6, %c0_7, %c0_8] : memref<1x8x1xf32, #tpu.memory_space<vmem>>, vector<1x8x1xf32>
    %11 = vector.shape_cast %10 : vector<1x8x1xf32> to vector<8x1xf32>
    %12 = vector.shape_cast %9 : vector<8x1xf32> to vector<1x8x1xf32>
    tpu.vector_store %arg4[%c0_6, %c0_7, %c0_8], %12 {strides = array<i32>} : memref<1x8x1xf32, #tpu.memory_space<vmem>>, vector<1x8x1xf32>,
    %c0_i32_9 = arith.constant 0 : i32
    %13 = arith.cmpi eq, %arg1, %c0_i32_9 : i32
    %14 = arith.extui %13 : i1 to i32
    %c0_i32_10 = arith.constant 0 : i32
    %15 = arith.cmpi ne, %14, %c0_i32_10 : i32
    scf.if %15 {
      %c0_11 = arith.constant 0 : index
      %c0_12 = arith.constant 0 : index
      %c0_13 = arith.constant 0 : index
      %16 = vector.load %arg4[%c0_11, %c0_12, %c0_13] : memref<1x8x1xf32, #tpu.memory_space<vmem>>, vector<1x8x1xf32>
      %17 = vector.shape_cast %16 : vector<1x8x1xf32> to vector<8x1xf32>
      %cst_14 = arith.constant 3.906250e-03 : f32
      %18 = vector.broadcast %cst_14 : f32 to vector<8x1xf32>
      %19 = arith.mulf %17, %18 : vector<8x1xf32>
      %20 = tpu.iota {dimensions = array<i32: 0>} : vector<8x1xi32>
      %cst_15 = arith.constant 0.000000e+00 : f32
      %21 = vector.broadcast %cst_15 : f32 to vector<8x1xf32>
      %c1_i32 = arith.constant 1 : i32
      %22 = tpu.dynamic_rotate %19 by %c1_i32 dim 0 : vector<8x1xf32>, i32 -> vector<8x1xf32>
      %c-1_i32 = arith.constant -1 : i32
      %23 = vector.broadcast %c-1_i32 : i32 to vector<8x1xi32>
      %24 = arith.addi %20, %23 : vector<8x1xi32>
      %c0_i32_16 = arith.constant 0 : i32
      %25 = vector.broadcast %c0_i32_16 : i32 to vector<8x1xi32>
      %26 = arith.cmpi sge, %24, %25 : vector<8x1xi32>
      %c-1_i32_17 = arith.constant -1 : i32
      %27 = vector.broadcast %c-1_i32_17 : i32 to vector<8x1xi32>
      %28 = arith.addi %20, %27 : vector<8x1xi32>
      %c8_i32 = arith.constant 8 : i32
      %29 = vector.broadcast %c8_i32 : i32 to vector<8x1xi32>
      %30 = arith.cmpi slt, %28, %29 : vector<8x1xi32>
      %31 = arith.andi %26, %30 : vector<8x1xi1>
      %c0_18 = arith.constant 0 : index
      %32 = memref.load %arg2[%c0_18] : memref<3xf32, #tpu.memory_space<smem>>
      %cst_19 = arith.constant 0.000000e+00 : f32
      %33 = vector.broadcast %cst_19 : f32 to vector<8x1xf32>
      %34 = arith.select %31, %22, %33 : vector<8x1xi1>, vector<8x1xf32>
      %35 = vector.broadcast %32 : f32 to vector<8x1xf32>
      %36 = arith.mulf %35, %34 : vector<8x1xf32>
      %37 = arith.addf %21, %36 : vector<8x1xf32>
      %c0_i32_20 = arith.constant 0 : i32
      %38 = vector.broadcast %c0_i32_20 : i32 to vector<8x1xi32>
      %39 = arith.addi %20, %38 : vector<8x1xi32>
      %c0_i32_21 = arith.constant 0 : i32
      %40 = vector.broadcast %c0_i32_21 : i32 to vector<8x1xi32>
      %41 = arith.cmpi sge, %39, %40 : vector<8x1xi32>
      %c0_i32_22 = arith.constant 0 : i32
      %42 = vector.broadcast %c0_i32_22 : i32 to vector<8x1xi32>
      %43 = arith.addi %20, %42 : vector<8x1xi32>
      %c8_i32_23 = arith.constant 8 : i32
      %44 = vector.broadcast %c8_i32_23 : i32 to vector<8x1xi32>
      %45 = arith.cmpi slt, %43, %44 : vector<8x1xi32>
      %46 = arith.andi %41, %45 : vector<8x1xi1>
      %c1 = arith.constant 1 : index
      %47 = memref.load %arg2[%c1] : memref<3xf32, #tpu.memory_space<smem>>
      %cst_24 = arith.constant 0.000000e+00 : f32
      %48 = vector.broadcast %cst_24 : f32 to vector<8x1xf32>
      %49 = arith.select %46, %19, %48 : vector<8x1xi1>, vector<8x1xf32>
      %50 = vector.broadcast %47 : f32 to vector<8x1xf32>
      %51 = arith.mulf %50, %49 : vector<8x1xf32>
      %52 = arith.addf %37, %51 : vector<8x1xf32>
      %c7_i32 = arith.constant 7 : i32
      %53 = tpu.dynamic_rotate %19 by %c7_i32 dim 0 : vector<8x1xf32>, i32 -> vector<8x1xf32>
      %c1_i32_25 = arith.constant 1 : i32
      %54 = vector.broadcast %c1_i32_25 : i32 to vector<8x1xi32>
      %55 = arith.addi %20, %54 : vector<8x1xi32>
      %c0_i32_26 = arith.constant 0 : i32
      %56 = vector.broadcast %c0_i32_26 : i32 to vector<8x1xi32>
      %57 = arith.cmpi sge, %55, %56 : vector<8x1xi32>
      %c1_i32_27 = arith.constant 1 : i32
      %58 = vector.broadcast %c1_i32_27 : i32 to vector<8x1xi32>
      %59 = arith.addi %20, %58 : vector<8x1xi32>
      %c8_i32_28 = arith.constant 8 : i32
      %60 = vector.broadcast %c8_i32_28 : i32 to vector<8x1xi32>
      %61 = arith.cmpi slt, %59, %60 : vector<8x1xi32>
      %62 = arith.andi %57, %61 : vector<8x1xi1>
      %c2 = arith.constant 2 : index
      %63 = memref.load %arg2[%c2] : memref<3xf32, #tpu.memory_space<smem>>
      %cst_29 = arith.constant 0.000000e+00 : f32
      %64 = vector.broadcast %cst_29 : f32 to vector<8x1xf32>
      %65 = arith.select %62, %53, %64 : vector<8x1xi1>, vector<8x1xf32>
      %66 = vector.broadcast %63 : f32 to vector<8x1xf32>
      %67 = arith.mulf %66, %65 : vector<8x1xf32>
      %68 = arith.addf %52, %67 : vector<8x1xf32>
      %69 = arith.negf %68 : vector<8x1xf32>
      %70 = math.exp %69 : vector<8x1xf32>
      %cst_30 = arith.constant 1.000000e+00 : f32
      %71 = vector.broadcast %cst_30 : f32 to vector<8x1xf32>
      %72 = arith.addf %71, %70 : vector<8x1xf32>
      %73 = arith.divf %71, %72 : vector<8x1xf32>
      %c0_31 = arith.constant 0 : index
      %c0_32 = arith.constant 0 : index
      %c0_33 = arith.constant 0 : index
      %74 = vector.load %arg4[%c0_31, %c0_32, %c0_33] : memref<1x8x1xf32, #tpu.memory_space<vmem>>, vector<1x8x1xf32>
      %75 = vector.shape_cast %74 : vector<1x8x1xf32> to vector<8x1xf32>
      %76 = vector.shape_cast %73 : vector<8x1xf32> to vector<1x8x1xf32>
      tpu.vector_store %arg4[%c0_31, %c0_32, %c0_33], %76 {strides = array<i32>} : memref<1x8x1xf32, #tpu.memory_space<vmem>>, vector<1x8x1xf32>,
    } else {
    }
    return
  }
  func.func @transform_0(%arg0: i32, %arg1: i32) -> i32 {
    %c0_i32 = arith.constant 0 : i32
    %c0_i32_0 = arith.constant 0 : i32
    return %c0_i32 : i32
  }
  func.func @transform_1(%arg0: i32, %arg1: i32) -> (i32, i32, i32) {
    %c0_i32 = arith.constant 0 : i32
    %c0_i32_0 = arith.constant 0 : i32
    return %arg0, %c0_i32, %arg1 : i32, i32, i32
  }
  func.func @transform_2(%arg0: i32, %arg1: i32) -> (i32, i32, i32) {
    %c0_i32 = arith.constant 0 : i32
    %c0_i32_0 = arith.constant 0 : i32
    %c0_i32_1 = arith.constant 0 : i32
    return %arg0, %c0_i32, %c0_i32_0 : i32, i32, i32
  }
}

</mosaic_0001>

<llo_original>
// kernel: tpu_custom_call.1
$region0: #{tpu_custom_call.1}
  #allocation0 [shape = 'u32[]', space=smem, size = 0x4, offset = 0x4, fixed_abs, tag = 'smem constant byte address 0x4 - core index']
  #allocation1 [shape = 'u32[72,128]{1,0:T(1,128)}', space=vmem, size = 0x9000, scoped, tag = 'internal scratch']
  %s0 = inlined_call_operand.hbm [shape: f32[3], index: 0, kind: input, shape index: {}]
  %s1 = inlined_call_operand.hbm [shape: f32[2,8,256], index: 1, kind: input, shape index: {}]
  %s2 = inlined_call_operand.vmem [shape: f32[2,8,1], index: 2, kind: output, shape index: {}]
  %s3 = sld [smem:[#allocation0]]
  $region57: #{tpu_custom_call.1} parent=0
    _
  %s5 = ssub.s32 1, %s3
  %s6 = scalar_select 0, %s5, %s3
  $region1: #{tpu_custom_call.1} parent=0
    #allocation2 [shape = 'u8[512]{0}', space=smem, size = 0x200, scoped, tag = 'input window, operand 0, single buffered']
    #allocation3 [shape = 's32[2]{0}', space=sflag, size = 0x8, scoped, tag = 'scoped memory for tpu_custom_call.1']
    #allocation4 [shape = 's32[2]{0}', space=sflag, size = 0x8, scoped, tag = 'scoped memory for tpu_custom_call.1']
    #allocation5 [shape = 'u8[16384]{0}', space=vmem, size = 0x4000, scoped, tag = 'input window, operand 1']
    %7 = vsyncpa [#allocation4], 0
    %8 = vsyncpa [#allocation3], 0
    %s9 = scalar_lea.sflag [#allocation3], 1
    %10 = vsyncpa %s9, 0
    loop: start=0, step=1, limit=4
    $region2: #{tpu_custom_call.1} parent=1 // loop_pre_header
      _
    $region3: #{tpu_custom_call.1} parent=1 // loop_header
      %s12 = sphi 0, %s16
      %p13 = scmp.ge.s32.totalorder %s12, 4
      %s19 = sphi 0, %s31
      %s20 = sphi 0, %s27
      %s21 = sphi 0, %s19
      %s22 = sphi 0, %s20
      %s23 = sphi 0, %s21
      %s24 = sphi 0, %s22
      %s32 = sphi 0, %s32
      %s34 = sphi 0, %s32
      %s35 = sphi 0, %s34
      %s49 = sphi 0, %s35
      %s57 = sphi 0, %s59
      %s60 = sphi 0, %s57
      %s61 = sphi 0, %s60
      %s77 = sphi 0, %s61
      %s83 = sphi 0, %s85
      %s86 = sphi 0, %s83
      %s87 = sphi 0, %s86
      %s103 = sphi 0, %s87
    $region4: #{tpu_custom_call.1} parent=1 // loop_header_branch
      %15 = sbr.rel (%p13) target = $region8
    $region5: #{tpu_custom_call.1} parent=1 // loop_body
      %s17 = ssub.s32 %s12, 1
      %s18 = ssub.s32 %s12, 2
      %s25 = sadd.s32 1, %s20
      %p26 = scmp.ge.s32.totalorder %s25, 1
      %s27 = scalar_select %p26, 0, %s25
      %s28 = sadd.s32 1, %s19
      %s29 = scalar_select %p26, %s28, %s19
      %p30 = scmp.ge.s32.totalorder %s29, 2
      %s31 = scalar_select %p30, 0, %s29
      %s33 = sadd.s32 %s32, 1
      %p36 = scmp.eq.s32.totalorder %s12, 1
      %p37 = scmp.ne.s32.totalorder %s32, %s34
      %p38 = scmp.eq.s32.totalorder %s12, 0
      %p39 = por %p37, %p38
      %p40 = scmp.ne.s32.totalorder %s32, %s34
      %p41 = scmp.eq.s32.totalorder %s17, 1
      %p42 = por %p40, %p41
      %p43 = scmp.ne.s32.totalorder %s34, %s35
      %p44 = scmp.eq.s32.totalorder %s17, 0
      %p45 = por %p43, %p44
      %p46 = scmp.ne.s32.totalorder %s34, %s35
      %p47 = scmp.eq.s32.totalorder %s18, 1
      %p48 = por %p46, %p47
      %p50 = scmp.ne.s32.totalorder %s35, %s49
      %p51 = scmp.eq.s32.totalorder %s18, 0
      %p52 = por %p50, %p51
      %s53 = ssub.s32 %s19, %s31
      %s54 = ssub.s32 %s20, %s27
      %s55 = sor.u32 %s53, %s54
      %p56 = scmp.eq.s32.totalorder %s55, 0
      %s58 = sadd.s32 %s57, 1
      %s59 = scalar_select %p56, %s57, %s58
      %p62 = pneg %p56
      %p63 = scmp.eq.s32.totalorder %s12, 1
      %p64 = por %p62, %p63
      %p65 = scmp.ne.s32.totalorder %s57, %s60
      %p66 = scmp.eq.s32.totalorder %s12, 0
      %p67 = por %p65, %p66
      %p68 = scmp.ne.s32.totalorder %s57, %s60
      %p69 = scmp.eq.s32.totalorder %s17, 1
      %p70 = por %p68, %p69
      %p71 = scmp.ne.s32.totalorder %s60, %s61
      %p72 = scmp.eq.s32.totalorder %s17, 0
      %p73 = por %p71, %p72
      %p74 = scmp.ne.s32.totalorder %s60, %s61
      %p75 = scmp.eq.s32.totalorder %s18, 1
      %p76 = por %p74, %p75
      %p78 = scmp.ne.s32.totalorder %s61, %s77
      %p79 = scmp.eq.s32.totalorder %s18, 0
      %p80 = por %p78, %p79
      %s81 = ssub.s32 %s19, %s31
      %p82 = scmp.eq.s32.totalorder %s81, 0
      %s84 = sadd.s32 %s83, 1
      %s85 = scalar_select %p82, %s83, %s84
      %p88 = pneg %p82
      %p89 = scmp.eq.s32.totalorder %s12, 1
      %p90 = por %p88, %p89
      %p91 = scmp.ne.s32.totalorder %s83, %s86
      %p92 = scmp.eq.s32.totalorder %s12, 0
      %p93 = por %p91, %p92
      %p94 = scmp.ne.s32.totalorder %s83, %s86
      %p95 = scmp.eq.s32.totalorder %s17, 1
      %p96 = por %p94, %p95
      %p97 = scmp.ne.s32.totalorder %s86, %s87
      %p98 = scmp.eq.s32.totalorder %s17, 0
      %p99 = por %p97, %p98
      %p100 = scmp.ne.s32.totalorder %s86, %s87
      %p101 = scmp.eq.s32.totalorder %s18, 1
      %p102 = por %p100, %p101
      %p104 = scmp.ne.s32.totalorder %s87, %s103
      %p105 = scmp.eq.s32.totalorder %s18, 0
      %p106 = por %p104, %p105
      %p107 = scmp.le.s32.totalorder 1, %s12
      %p108 = scmp.lt.s32.totalorder %s12, 3
      %p109 = pnand %p107, %p108
      %p110 = pneg %p109
      // Predicated region
      $region9: #{tpu_custom_call.1} parent=5 // pred_check
        _
      $region10: #{tpu_custom_call.1} parent=5 // pred_check_branch
        %112 = sbr.rel (%p109) target = $region12
      $region11: #{tpu_custom_call.1} parent=5 // pred_region
        %s113 = ssub.s32 %s12, 1
        // Predicated region
        $region13: #{tpu_custom_call.1} parent=11 // pred_check
          %p114 = pneg %p45
        $region14: #{tpu_custom_call.1} parent=11 // pred_check_branch
          %116 = sbr.rel (%p114) target = $region16
        $region15: #{tpu_custom_call.1} parent=11 // pred_region
          %118 = vsyncadd [#allocation4], 0
          %s120 = sshll.u32 %s0, 4
          %s121 = int_to_ptr.hbm [resolvable:$true] %s120
          %123 = dma.hbm_to_smem %s121, 16, [#allocation2], [#allocation4]
        $region16: #{tpu_custom_call.1} parent=11 // pred_fallthru
          _
      $region12: #{tpu_custom_call.1} parent=5 // pred_fallthru
        _
      %p124 = scmp.lt.s32.totalorder %s12, 2
      // Predicated region
      $region17: #{tpu_custom_call.1} parent=5 // pred_check
        %p125 = pneg %p124
      $region18: #{tpu_custom_call.1} parent=5 // pred_check_branch
        %127 = sbr.rel (%p125) target = $region20
      $region19: #{tpu_custom_call.1} parent=5 // pred_region
        // Predicated region
        $region21: #{tpu_custom_call.1} parent=19 // pred_check
          %p128 = pneg %p67
        $region22: #{tpu_custom_call.1} parent=19 // pred_check_branch
          %130 = sbr.rel (%p128) target = $region24
        $region23: #{tpu_custom_call.1} parent=19 // pred_region
          %s131 = sand.u32 %s57, 1
          %s132 = scalar_lea.sflag [#allocation3], %s131
          %s133 = sand.u32 %s57, 1
          %s134 = smul.addr %s133, 16
          %s135 = scalar_lea.vmem [#allocation5], %s134
          %s136 = smul.u32 2, %s20
          %138 = vsyncadd %s132, 0
          %s139 = smul.addr %s19, 2
          %s140 = sadd.s32 %s136, %s139
          %s141 = smul.addr %s140, 8
          %s142 = scalar_lea.hbm %s1, %s141
          %s144 = sshll.u32 %s142, 4
          %s145 = int_to_ptr.hbm [resolvable:$true] %s144
          %s146 = sshll.u32 %s135, 4
          %s147 = int_to_ptr.vmem [resolvable:$true] %s146
          %149 = dma.hbm_to_vmem [thread:$0]  %s145, 256, %s147, %s132
        $region24: #{tpu_custom_call.1} parent=19 // pred_fallthru
          _
      $region20: #{tpu_custom_call.1} parent=5 // pred_fallthru
        _
      %p150 = scmp.le.s32.totalorder 1, %s12
      %p151 = scmp.lt.s32.totalorder %s12, 3
      %p152 = pnand %p150, %p151
      %p153 = pneg %p152
      // Predicated region
      $region25: #{tpu_custom_call.1} parent=5 // pred_check
        _
      $region26: #{tpu_custom_call.1} parent=5 // pred_check_branch
        %155 = sbr.rel (%p152) target = $region28
      $region27: #{tpu_custom_call.1} parent=5 // pred_region
        %s156 = ssub.s32 %s12, 1
        // Predicated region
        $region29: #{tpu_custom_call.1} parent=27 // pred_check
          %p157 = pneg %p45
        $region30: #{tpu_custom_call.1} parent=27 // pred_check_branch
          %159 = sbr.rel (%p157) target = $region32
        $region31: #{tpu_custom_call.1} parent=27 // pred_region
          %161 = dma.done [#allocation4], 16
        $region32: #{tpu_custom_call.1} parent=27 // pred_fallthru
          _
        %s162 = sand.u32 %s60, 1
        %s163 = scalar_lea.sflag [#allocation3], %s162
        %s164 = sand.u32 %s60, 1
        %s165 = smul.addr %s164, 16
        %s166 = scalar_lea.vmem [#allocation5], %s165
        // Predicated region
        $region33: #{tpu_custom_call.1} parent=27 // pred_check
          %p167 = pneg %p73
        $region34: #{tpu_custom_call.1} parent=27 // pred_check_branch
          %169 = sbr.rel (%p167) target = $region36
        $region35: #{tpu_custom_call.1} parent=27 // pred_region
          %171 = dma.done %s163, 256
        $region36: #{tpu_custom_call.1} parent=27 // pred_fallthru
          _
        %172 = sfence
        %p173 = pneg %p45
        %p174 = pneg %p42
        %s175 = sand.u32 %s60, 1
        %s176 = scalar_lea.sflag [#allocation3], %s175
        %s177 = sand.u32 %s60, 1
        %s178 = smul.addr %s177, 16
        %s179 = scalar_lea.vmem [#allocation5], %s178
        %p180 = pneg %p73
        %p181 = pneg %p70
        %p182 = pneg %p99
        %p183 = pneg %p96
        %p184 = scmp.lt.s32.totalorder %s21, 1
        %s185 = scalar_select %p184, %s21, 1
        %s186 = smul.addr %s185, 8
        %s187 = scalar_lea.vmem %s2, %s186
        %s188 = smul.u32 2, %s22
        %p189 = scmp.lt.s32.totalorder %s21, 1
        %s190 = scalar_select %p189, %s21, 1
        %s191 = smul.addr %s190, 8
        %s192 = scalar_lea.vmem %s2, %s191
        %p193 = scmp.eq.s32.totalorder %s22, 0
        // Predicated region
        $region37: #{tpu_custom_call.1} parent=27 // pred_check
          %p194 = pneg %p193
        $region38: #{tpu_custom_call.1} parent=27 // pred_check_branch
          %196 = sbr.rel (%p194) target = $region40
        $region39: #{tpu_custom_call.1} parent=27 // pred_region
          %vm197 = vcmask 7168
          %198 = vst.msk [vmem:[%s192] sm:$0xff] %vm197, 0.0
        $region40: #{tpu_custom_call.1} parent=27 // pred_fallthru
          _
        %v199 = vld [vmem:[%s166] sm:$0xff]
        %v200 = vld [vmem:[%s166 + $0x8] sm:$0xff]
        %v201 = vld [vmem:[%s192] sm:$0xff]
        %v202 = vadd.f32 %v199, %v200
        %203 = vadd.xlane.f32.xlu0 %v202
        %v204 = vpop.xlane.xlu0 %203
        %v205 = vadd.f32 %v201, %v204
        %vm206 = vcmask 7168
        %207 = vst.msk [vmem:[%s192] sm:$0xff] %vm206, %v205
        // Predicated region
        $region41: #{tpu_custom_call.1} parent=27 // pred_check
          %p208 = pneg %p193
        $region42: #{tpu_custom_call.1} parent=27 // pred_check_branch
          %210 = sbr.rel (%p208) target = $region44
        $region43: #{tpu_custom_call.1} parent=27 // pred_region
          %v211 = vld [vmem:[%s192] sm:$0xff]
          %v212 = vmul.f32 %v211, 0.00390625
          %v213 = vlaneseq
          %v214 = vshrl.u32 %v213, 7
          %v215 = vrot.slane %v212, 7
          %v216 = vadd.s32 %v214, 4294967295
          %vm217 = vcmp.ge.s32.totalorder %v216, 0
          %vm218 = vcmp.lt.s32.totalorder %v216, 8
          %vm219 = vmand %vm217, %vm218
          %s220 = sld [smem:[#allocation2]]
          %v221 = vsel %vm219, %v215, 0.0
          %v222 = vstv %s220
          %v223 = vmul.f32 %v222, %v221
          %v224 = vadd.f32 %v223, 0.0
          %vm225 = vcmp.ge.s32.totalorder %v214, 0
          %vm226 = vcmp.lt.s32.totalorder %v214, 8
          %vm227 = vmand %vm225, %vm226
          %s228 = sld [smem:[#allocation2 + $0x1]]
          %v229 = vsel %vm227, %v212, 0.0
          %v230 = vstv %s228
          %v231 = vmul.f32 %v230, %v229
          %v232 = vadd.f32 %v224, %v231
          %v233 = vrot.slane %v212, 1
          %v234 = vadd.s32 %v214, 1
          %vm235 = vcmp.ge.s32.totalorder %v234, 0
          %vm236 = vcmp.lt.s32.totalorder %v234, 8
          %vm237 = vmand %vm235, %vm236
          %s238 = sld [smem:[#allocation2 + $0x2]]
          %v239 = vsel %vm237, %v233, 0.0
          %v240 = vstv %s238
          %v241 = vmul.f32 %v240, %v239
          %v242 = vadd.f32 %v232, %v241
          %v243 = vxor.u32 %v242, 2147483648
          %v244 = vmul.f32 %v243, 1.442695
          %v245 = vpow.pop %v244
          %v246 = vadd.f32 %v245, 1.0
          %v247 = vrcp.pop %v246
          %v248 = vmul.f32 %v246, %v247
          %v249 = vsub.f32 1.0, %v248
          %v250 = vmul.f32 %v247, %v249
          %v251 = vadd.f32 %v247, %v250
          %vm252 = vweird.f32 %v246
          %vm253 = vweird.f32 %v247
          %vm254 = vmor %vm252, %vm253
          %v255 = vsel %vm254, %v247, %v251
          %v256 = vand.u32 2147483647, %v246
          %vm257 = vcmp.eq.f32.partialorder %v256, 8.507059e+37
          %v258 = vand.u32 %v246, 2147483648
          %v259 = vor.u32 1.1754944e-38, %v258
          %v260 = vsel %vm257, %v259, %v255
          %v261 = vmul.f32 1.0, %v260
          %262 = vst.msk [vmem:[%s192] sm:$0xff] %vm206, %v261
        $region44: #{tpu_custom_call.1} parent=27 // pred_fallthru
          _
        %p263 = scmp.lt.s32.totalorder %s21, 1
        %s264 = scalar_select %p263, %s21, 1
        %s265 = smul.addr %s264, 8
        %s266 = scalar_lea.vmem %s2, %s265
        // Predicated region
        $region45: #{tpu_custom_call.1} parent=27 // pred_check
          %p267 = pneg %p96
        $region46: #{tpu_custom_call.1} parent=27 // pred_check_branch
          %269 = sbr.rel (%p267) target = $region48
        $region47: #{tpu_custom_call.1} parent=27 // pred_region
          _
        $region48: #{tpu_custom_call.1} parent=27 // pred_fallthru
          _
      $region28: #{tpu_custom_call.1} parent=5 // pred_fallthru
        _
      %p270 = scmp.le.s32.totalorder 2, %s12
      // Predicated region
      $region49: #{tpu_custom_call.1} parent=5 // pred_check
        %p271 = pneg %p270
      $region50: #{tpu_custom_call.1} parent=5 // pred_check_branch
        %273 = sbr.rel (%p271) target = $region52
      $region51: #{tpu_custom_call.1} parent=5 // pred_region
        %s274 = ssub.s32 %s12, 2
        // Predicated region
        $region53: #{tpu_custom_call.1} parent=51 // pred_check
          %p275 = pneg %p102
        $region54: #{tpu_custom_call.1} parent=51 // pred_check_branch
          %277 = sbr.rel (%p275) target = $region56
        $region55: #{tpu_custom_call.1} parent=51 // pred_region
          %p278 = scmp.lt.s32.totalorder %s23, 1
          %s279 = scalar_select %p278, %s23, 1
          %s280 = smul.addr %s279, 8
          %s281 = scalar_lea.vmem %s2, %s280
        $region56: #{tpu_custom_call.1} parent=51 // pred_fallthru
          _
      $region52: #{tpu_custom_call.1} parent=5 // pred_fallthru
        _
    $region6: #{tpu_custom_call.1} parent=1 // loop_footer
      %s16 = sadd.s32 1, %s12
    $region7: #{tpu_custom_call.1} parent=1 // loop_footer_branch
      %11 = sbr.rel target = $region3
    $region8: #{tpu_custom_call.1} parent=1 // loop_exit
      _
    %282 = vsyncpa [#allocation3], 1
    %s283 = scalar_lea.sflag [#allocation3], 1
    %284 = vsyncpa %s283, 1
    %285 = vsyncpa [#allocation4], 1
    %s286 = scalar_lea.sflag [#allocation4], 1
    %287 = vsyncpa %s286, 1

</llo_original>
